<compile_context>
chip_gen: v6e
topology: v6e:2x2x1
jax: 0.10.0
libtpu: 0.0.40
codegen_flags: <defaults>
</compile_context>

<pallas_src>
import functools
import numpy as np
import jax
import jax.numpy as jnp
from jax import lax
from jax.experimental import pallas as pl
from jax.experimental.pallas import tpu as pltpu

EPS = 1e-5


def make_interp_matrix(out_size: int, in_size: int) -> np.ndarray:
    """1D bilinear interpolation matrix, align_corners=True (PyTorch semantics)."""
    M = np.zeros((out_size, in_size), dtype=np.float64)
    if out_size == 1 or in_size == 1:
        M[:, 0] = 1.0
        return M
    scale = (in_size - 1) / (out_size - 1)
    for o in range(out_size):
        src = o * scale
        lo = min(int(np.floor(src)), in_size - 1)
        hi = min(lo + 1, in_size - 1)
        frac = src - lo
        M[o, lo] += 1.0 - frac
        M[o, hi] += frac
    return M


def _round_up(x: int, m: int) -> int:
    return ((x + m - 1) // m) * m


# --------------------------- host-side constants ---------------------------- #

def build_constants(conv_w, H, W, Cin, Cout, NB):
    """Host-side constant matrices (built once, in f64, cast once afterwards)."""
    Ho, Wo = 2 * H, 2 * W
    WC, WoCo = W * Cin, Wo * Cout
    Kpad = _round_up(WC, 128)          # lane-pad the contraction dim -> unmasked loads

    w64 = np.asarray(conv_w, np.float64)                       # (Cout, Cin, 3, 3)
    Uw = make_interp_matrix(Wo, W)                             # (Wo, W)
    Uh = make_interp_matrix(Ho, H)                             # (Ho, H)

    # W-upsample folded into the 3 kh conv taps (includes the left/right halo):
    #   Tf[d][(w,ci),(wo,co)] = sum_kw UwPad[wo+kw, w] * W[co, ci, d, kw]
    UwPad = np.zeros((Wo + 2, W), np.float64)
    UwPad[1:Wo + 1] = Uw
    UwS = np.stack([UwPad[kw:kw + Wo] for kw in range(3)])     # (3, Wo, W)
    Tf = np.einsum("kow,cidk->dwioc", UwS, w64).reshape(3, WC, WoCo)
    # taps concatenated along columns + zero-padded K rows -> one (Kpad, 3*WoCo) matmul
    Tfcat = np.zeros((Kpad, 3 * WoCo), np.float64)
    for d in range(3):
        Tfcat[:WC, d * WoCo:(d + 1) * WoCo] = Tf[d]

    # H-upsample per kh tap (rows = the Ho valid conv-output rows only, no padding),
    # block-diagonal over the NB images of a grid step, taps concatenated along K.
    UhPad = np.zeros((Ho + 2, H), np.float64)
    UhPad[1:Ho + 1] = Uh
    UhS = np.stack([UhPad[d:d + Ho] for d in range(3)])        # (3, Ho, H)
    UhCat = np.zeros((NB * Ho, 3 * NB * H), np.float64)
    for d in range(3):
        for n in range(NB):
            UhCat[n * Ho:(n + 1) * Ho,
                  d * NB * H + n * H:d * NB * H + (n + 1) * H] = UhS[d]

    # Gather/scatter matrices for per-Cout BN stats in the (wo, cout) lane layout.
    G = np.tile(np.eye(Cout, dtype=np.float32), (Wo, 1))       # (WoCo, Cout)
    GT = np.ascontiguousarray(G.T)                             # (Cout, WoCo)
    return Tfcat.astype(np.float32), UhCat.astype(np.float32), G, GT, Kpad


# ------------------------------ Pallas kernel ------------------------------- #

def up_fused_kernel(x2_ref, tf_ref, uh_ref, g_ref, gt_ref, gamma_ref, beta_ref,
                    o_ref, stat_sc, *, num_groups, rows_out, wo_co, inv_count, eps):
    """Fused bilinear-upsample + 3x3 conv + BatchNorm(train) + ReLU.

    Layout: rows = (n, ho), lanes = (wo, cout) -> lane-dense unmasked stores.
    The grid iterates over groups of NB images ("arbitrary"); the output block is
    resident in VMEM across the grid, BN statistics accumulate in scratch, and the
    last step applies the scale/shift + ReLU sweep in place (no second launch).
    """
    step = pl.program_id(0)
    last = pl.num_programs(0) - 1

    @pl.when(step == 0)
    def _init():
        stat_sc[...] = jnp.zeros_like(stat_sc)

    # (1) W-upsample + all 3 kh taps as one K=Kpad contraction (bf16 MXU, f32 acc).
    b_all = jnp.dot(x2_ref[...], tf_ref[...],
                    preferred_element_type=jnp.float32).astype(jnp.bfloat16)
    # (2) restack the taps along rows: (3*NB*H, Wo*Cout).
    b_stack = jnp.concatenate(
        [b_all[:, d * wo_co:(d + 1) * wo_co] for d in range(3)], axis=0)
    # (3) H-upsample + kh-tap accumulation as one K=3*NB*H contraction.
    acc = jnp.dot(uh_ref[...], b_stack, preferred_element_type=jnp.float32)

    # Raw conv output for this group -> resident output block.
    if num_groups == 1:
        o_ref[...] = acc
    else:
        row0 = pl.multiple_of(step * rows_out, 8)
        o_ref[pl.ds(row0, rows_out), :] = acc

    # Per-(wo,cout)-column sum / sum-of-squares (all rows are valid: Hp == Ho).
    s = jnp.sum(acc, axis=0, keepdims=True)
    q = jnp.sum(acc * acc, axis=0, keepdims=True)
    stat_sc[...] += jnp.concatenate([s, q], axis=0)

    # Last step: finalize BN scale/shift and normalize + ReLU the whole output.
    @pl.when(step == last)
    def _finalize():
        stat_c = jnp.dot(stat_sc[...], g_ref[...],
                         preferred_element_type=jnp.float32) * inv_count   # (2, Cout)
        stat_t = jnp.dot(stat_c, gt_ref[...],
                         preferred_element_type=jnp.float32)               # (2, WoCo)
        mean_t = stat_t[0:1, :]
        var_t = stat_t[1:2, :] - mean_t * mean_t                           # biased var
        inv_std = lax.rsqrt(var_t + eps)
        scale_t = gamma_ref[...] * inv_std
        shift_t = beta_ref[...] - mean_t * scale_t
        o_ref[...] = jnp.maximum(o_ref[...] * scale_t + shift_t, 0.0)


# ------------------------------ Host wrapper ------------------------------- #

def up_forward(x_nchw, conv_w, gamma, beta):
    """Forward of `Up(in_channels, out_channels, bilinear=True)` (training-mode BN)."""
    x_nchw = jnp.asarray(x_nchw, jnp.float32)
    N, Cin, H, W = x_nchw.shape
    Cout = conv_w.shape[0]
    Ho, Wo = 2 * H, 2 * W
    WC, WoCo = W * Cin, Wo * Cout
    assert Ho % 8 == 0, "H must be a multiple of 4"
    # TODO(synk): for Ho % 8 != 0, pad the output rows and mask the BN statistics.

    # Images per grid step (block-diagonal H-upsample scales O(NB^2); keep NB small).
    NB = 1
    for cand in range(min(N, 8), 0, -1):
        if N % cand == 0:
            NB = cand
            break
    num_groups = N // NB

    Tfcat, UhCat, G, GT, Kpad = build_constants(conv_w, H, W, Cin, Cout, NB)
    # TODO(synk): Tfcat is O(W^2 * Cin * Cout); for large UNet decoder shapes tile
    # its (wo, cout) column dimension with an extra grid axis to stay inside VMEM.

    # Tiny relayout of the (small, pre-upsample) input at the API boundary:
    # NCHW -> rows=(n,h), lanes=(w,cin), lane-padded to 128, bf16.
    x2 = x_nchw.transpose(0, 2, 3, 1).reshape(N * H, WC)
    if Kpad != WC:
        x2 = jnp.pad(x2, ((0, 0), (0, Kpad - WC)))
    x2 = x2.astype(jnp.bfloat16)

    tf = jnp.asarray(Tfcat, jnp.bfloat16)                      # (Kpad, 3*WoCo)
    uh = jnp.asarray(UhCat, jnp.bfloat16)                      # (NB*Ho, 3*NB*H)
    g_m = jnp.asarray(G, jnp.float32)                          # (WoCo, Cout)
    gt_m = jnp.asarray(GT, jnp.float32)                        # (Cout, WoCo)
    gamma_t = jnp.tile(jnp.asarray(gamma, jnp.float32).reshape(1, Cout), (1, Wo))
    beta_t = jnp.tile(jnp.asarray(beta, jnp.float32).reshape(1, Cout), (1, Wo))

    rows_in, rows_out = NB * H, NB * Ho
    kernel = functools.partial(
        up_fused_kernel, num_groups=num_groups, rows_out=rows_out, wo_co=WoCo,
        inv_count=1.0 / float(N * Ho * Wo), eps=EPS)

    yflat = pl.pallas_call(
        kernel,
        out_shape=jax.ShapeDtypeStruct((N * Ho, WoCo), jnp.float32),
        grid_spec=pltpu.PrefetchScalarGridSpec(
            num_scalar_prefetch=0,
            grid=(num_groups,),
            in_specs=[
                pl.BlockSpec((rows_in, Kpad), lambda i: (i, 0)),           # x2 group
                pl.BlockSpec((Kpad, 3 * WoCo), lambda i: (0, 0)),          # folded taps
                pl.BlockSpec((rows_out, 3 * rows_in), lambda i: (0, 0)),   # H-upsample
                pl.BlockSpec((WoCo, Cout), lambda i: (0, 0)),              # G
                pl.BlockSpec((Cout, WoCo), lambda i: (0, 0)),              # G^T
                pl.BlockSpec((1, WoCo), lambda i: (0, 0)),                 # gamma tiled
                pl.BlockSpec((1, WoCo), lambda i: (0, 0)),                 # beta tiled
            ],
            out_specs=pl.BlockSpec((N * Ho, WoCo), lambda i: (0, 0)),      # resident
            scratch_shapes=[pltpu.VMEM((2, WoCo), jnp.float32)],           # sum / sumsq
        ),
        compiler_params=pltpu.CompilerParams(
            # TODO(synk): on v7x with many groups, add a "parallel" axis with
            # per-core partial BN stats to use the second TensorCore.
            dimension_semantics=("arbitrary",),
            vmem_limit_bytes=64 * 1024 * 1024),
    )(x2, tf, uh, g_m, gt_m, gamma_t, beta_t)

    # API boundary: back to NCHW (no crop needed, Hp == Ho).
    return yflat.reshape(N, Ho, Wo, Cout).transpose(0, 3, 1, 2)


# ------------------------------ Pure-JAX reference ------------------------- #

def reference(x_nchw, conv_w, gamma, beta):
    N, Cin, H, W = x_nchw.shape
    Ho, Wo = 2 * H, 2 * W
    hi = lax.Precision.HIGHEST
    Uh = jnp.asarray(make_interp_matrix(Ho, H), jnp.float32)
    Uw = jnp.asarray(make_interp_matrix(Wo, W), jnp.float32)
    xu = jnp.einsum("oh,nchw,pw->ncop", Uh, x_nchw, Uw, precision=hi)
    y = lax.conv_general_dilated(
        xu, conv_w, window_strides=(1, 1), padding=((1, 1), (1, 1)),
        dimension_numbers=("NCHW", "OIHW", "NCHW"), precision=hi)
    mean = y.mean(axis=(0, 2, 3), keepdims=True)
    var = y.var(axis=(0, 2, 3), keepdims=True)        # biased, as PyTorch BN training
    yn = (y - mean) / jnp.sqrt(var + EPS)
    yn = yn * gamma.reshape(1, -1, 1, 1) + beta.reshape(1, -1, 1, 1)
    return jnp.maximum(yn, 0.0)


if __name__ == "__main__":
    N, Cin, Cout, H, W = 2, 4, 8, 16, 16

    key = jax.random.PRNGKey(0)
    kx, kw = jax.random.split(key)
    x = jax.random.normal(kx, (N, Cin, H, W), dtype=jnp.float32)
    conv_w = 0.1 * jax.random.normal(kw, (Cout, Cin, 3, 3), dtype=jnp.float32)
    gamma = 1.0 + 0.1 * jnp.arange(Cout, dtype=jnp.float32)
    beta = 0.01 * jnp.arange(Cout, dtype=jnp.float32)

    y_kernel = jax.block_until_ready(up_forward(x, conv_w, gamma, beta))
    y_ref = jax.block_until_ready(reference(x, conv_w, gamma, beta))

    # Kernel runs the upsample/conv contractions in bf16 (f32 accumulation) while
    # the reference is f32-HIGHEST; outputs are BN-normalized (unit variance).
    np.testing.assert_allclose(np.asarray(y_kernel), np.asarray(y_ref),
                               rtol=5e-2, atol=5e-2)
    print("KERNEL_OK")
</pallas_src>

<mosaic_0001>
module attributes {stable_mosaic.version = 11 : i64} {
  func.func @up_fused_kernel(%arg0: i32, %arg1: memref<32x128xbf16, #tpu.memory_space<vmem>>, %arg2: memref<128x768xbf16, #tpu.memory_space<vmem>>, %arg3: memref<64x96xbf16, #tpu.memory_space<vmem>>, %arg4: memref<256x8xf32, #tpu.memory_space<vmem>>, %arg5: memref<8x256xf32, #tpu.memory_space<vmem>>, %arg6: memref<1x256xf32, #tpu.memory_space<vmem>>, %arg7: memref<1x256xf32, #tpu.memory_space<vmem>>, %arg8: memref<64x256xf32, #tpu.memory_space<vmem>>, %arg9: memref<2x256xf32, #tpu.memory_space<vmem>>) attributes {dimension_semantics = [#tpu.dimension_semantics<arbitrary>], iteration_bounds = array<i64: 1>, scalar_prefetch = 0 : i64, scratch_operands = 1 : i64, tpu.core_type = #tpu.core_type<tc>, window_params = [{transform_indices = @transform_0, window_bounds = array<i64: 32, 128>}, {pipeline_mode = #tpu.pipeline_mode<synchronous>, transform_indices = @transform_1, window_bounds = array<i64: 128, 768>}, {pipeline_mode = #tpu.pipeline_mode<synchronous>, transform_indices = @transform_2, window_bounds = array<i64: 64, 96>}, {pipeline_mode = #tpu.pipeline_mode<synchronous>, transform_indices = @transform_3, window_bounds = array<i64: 256, 8>}, {pipeline_mode = #tpu.pipeline_mode<synchronous>, transform_indices = @transform_4, window_bounds = array<i64: 8, 256>}, {pipeline_mode = #tpu.pipeline_mode<synchronous>, transform_indices = @transform_5, window_bounds = array<i64: 1, 256>}, {pipeline_mode = #tpu.pipeline_mode<synchronous>, transform_indices = @transform_6, window_bounds = array<i64: 1, 256>}, {pipeline_mode = #tpu.pipeline_mode<synchronous>, transform_indices = @transform_7, window_bounds = array<i64: 64, 256>}]} {
    %c0_i32 = arith.constant 0 : i32
    %0 = arith.cmpi eq, %arg0, %c0_i32 : i32
    %1 = arith.extui %0 : i1 to i32
    %c0_i32_0 = arith.constant 0 : i32
    %2 = arith.cmpi ne, %1, %c0_i32_0 : i32
    scf.if %2 {
      %cst_17 = arith.constant 0.000000e+00 : f32
      %26 = vector.broadcast %cst_17 : f32 to vector<2x256xf32>
      %c0_18 = arith.constant 0 : index
      %c0_19 = arith.constant 0 : index
      %27 = vector.load %arg9[%c0_18, %c0_19] : memref<2x256xf32, #tpu.memory_space<vmem>>, vector<2x256xf32>
      tpu.vector_store %arg9[%c0_18, %c0_19], %26 {strides = array<i32>} : memref<2x256xf32, #tpu.memory_space<vmem>>, vector<2x256xf32>,
    } else {
    }
    %c0 = arith.constant 0 : index
    %c0_1 = arith.constant 0 : index
    %3 = vector.load %arg1[%c0, %c0_1] : memref<32x128xbf16, #tpu.memory_space<vmem>>, vector<32x128xbf16>
    %c0_2 = arith.constant 0 : index
    %c0_3 = arith.constant 0 : index
    %4 = vector.load %arg2[%c0_2, %c0_3] : memref<128x768xbf16, #tpu.memory_space<vmem>>, vector<128x768xbf16>
    %cst = arith.constant dense<0.000000e+00> : vector<32x768xf32>
    %5 = tpu.matmul %3, %4, %cst {dimension_numbers = #tpu.dot_dimension_numbers<[1], [0], [0], [1], [0, 0, 1, 1], [], []>} : vector<32x128xbf16>, vector<128x768xbf16>, vector<32x768xf32> -> vector<32x768xf32>
    %6 = arith.truncf %5 : vector<32x768xf32> to vector<32x768xbf16>
    %7 = vector.extract_strided_slice %6 {offsets = [0, 0], sizes = [32, 256], strides = [1, 1]} : vector<32x768xbf16> to vector<32x256xbf16>
    %8 = vector.extract_strided_slice %6 {offsets = [0, 256], sizes = [32, 256], strides = [1, 1]} : vector<32x768xbf16> to vector<32x256xbf16>
    %9 = vector.extract_strided_slice %6 {offsets = [0, 512], sizes = [32, 256], strides = [1, 1]} : vector<32x768xbf16> to vector<32x256xbf16>
    %10 = tpu.concatenate %7, %8, %9 in 0 : vector<32x256xbf16>, vector<32x256xbf16>, vector<32x256xbf16> -> vector<96x256xbf16>
    %c0_4 = arith.constant 0 : index
    %c0_5 = arith.constant 0 : index
    %11 = vector.load %arg3[%c0_4, %c0_5] : memref<64x96xbf16, #tpu.memory_space<vmem>>, vector<64x96xbf16>
    %cst_6 = arith.constant dense<0.000000e+00> : vector<64x256xf32>
    %12 = tpu.matmul %11, %10, %cst_6 {dimension_numbers = #tpu.dot_dimension_numbers<[1], [0], [0], [1], [0, 0, 1, 1], [], []>} : vector<64x96xbf16>, vector<96x256xbf16>, vector<64x256xf32> -> vector<64x256xf32>
    %c0_7 = arith.constant 0 : index
    %c0_8 = arith.constant 0 : index
    %13 = vector.load %arg8[%c0_7, %c0_8] : memref<64x256xf32, #tpu.memory_space<vmem>>, vector<64x256xf32>
    tpu.vector_store %arg8[%c0_7, %c0_8], %12 {strides = array<i32>} : memref<64x256xf32, #tpu.memory_space<vmem>>, vector<64x256xf32>,
    %cst_9 = arith.constant dense<0.000000e+00> : vector<256xf32>
    %14 = vector.multi_reduction <add>, %12, %cst_9 [0] : vector<64x256xf32> to vector<256xf32>
    %15 = vector.shape_cast %14 : vector<256xf32> to vector<1x256xf32>
    %16 = arith.mulf %12, %12 : vector<64x256xf32>
    %cst_10 = arith.constant dense<0.000000e+00> : vector<256xf32>
    %17 = vector.multi_reduction <add>, %16, %cst_10 [0] : vector<64x256xf32> to vector<256xf32>
    %18 = vector.shape_cast %17 : vector<256xf32> to vector<1x256xf32>
    %c0_11 = arith.constant 0 : index
    %c0_12 = arith.constant 0 : index
    %19 = vector.load %arg9[%c0_11, %c0_12] : memref<2x256xf32, #tpu.memory_space<vmem>>, vector<2x256xf32>
    %20 = tpu.concatenate %15, %18 in 0 : vector<1x256xf32>, vector<1x256xf32> -> vector<2x256xf32>
    %21 = arith.addf %19, %20 : vector<2x256xf32>
    %c0_13 = arith.constant 0 : index
    %c0_14 = arith.constant 0 : index
    %22 = vector.load %arg9[%c0_13, %c0_14] : memref<2x256xf32, #tpu.memory_space<vmem>>, vector<2x256xf32>
    tpu.vector_store %arg9[%c0_13, %c0_14], %21 {strides = array<i32>} : memref<2x256xf32, #tpu.memory_space<vmem>>, vector<2x256xf32>,
    %c0_i32_15 = arith.constant 0 : i32
    %23 = arith.cmpi eq, %arg0, %c0_i32_15 : i32
    %24 = arith.extui %23 : i1 to i32
    %c0_i32_16 = arith.constant 0 : i32
    %25 = arith.cmpi ne, %24, %c0_i32_16 : i32
    scf.if %25 {
      %c0_17 = arith.constant 0 : index
      %c0_18 = arith.constant 0 : index
      %26 = vector.load %arg9[%c0_17, %c0_18] : memref<2x256xf32, #tpu.memory_space<vmem>>, vector<2x256xf32>
      %c0_19 = arith.constant 0 : index
      %c0_20 = arith.constant 0 : index
      %27 = vector.load %arg4[%c0_19, %c0_20] : memref<256x8xf32, #tpu.memory_space<vmem>>, vector<256x8xf32>
      %cst_21 = arith.constant dense<0.000000e+00> : vector<2x8xf32>
      %28 = tpu.matmul %26, %27, %cst_21 {dimension_numbers = #tpu.dot_dimension_numbers<[1], [0], [0], [1], [0, 0, 1, 1], [], []>} : vector<2x256xf32>, vector<256x8xf32>, vector<2x8xf32> -> vector<2x8xf32>
      %cst_22 = arith.constant 4.8828125E-4 : f32
      %29 = vector.broadcast %cst_22 : f32 to vector<2x8xf32>
      %30 = arith.mulf %28, %29 : vector<2x8xf32>
      %c0_23 = arith.constant 0 : index
      %c0_24 = arith.constant 0 : index
      %31 = vector.load %arg5[%c0_23, %c0_24] : memref<8x256xf32, #tpu.memory_space<vmem>>, vector<8x256xf32>
      %cst_25 = arith.constant dense<0.000000e+00> : vector<2x256xf32>
      %32 = tpu.matmul %30, %31, %cst_25 {dimension_numbers = #tpu.dot_dimension_numbers<[1], [0], [0], [1], [0, 0, 1, 1], [], []>} : vector<2x8xf32>, vector<8x256xf32>, vector<2x256xf32> -> vector<2x256xf32>
      %33 = vector.extract_strided_slice %32 {offsets = [0, 0], sizes = [1, 256], strides = [1, 1]} : vector<2x256xf32> to vector<1x256xf32>
      %34 = vector.extract_strided_slice %32 {offsets = [1, 0], sizes = [1, 256], strides = [1, 1]} : vector<2x256xf32> to vector<1x256xf32>
      %35 = arith.mulf %33, %33 : vector<1x256xf32>
      %36 = arith.subf %34, %35 : vector<1x256xf32>
      %cst_26 = arith.constant 9.99999974E-6 : f32
      %37 = vector.broadcast %cst_26 : f32 to vector<1x256xf32>
      %38 = arith.addf %36, %37 : vector<1x256xf32>
      %39 = math.rsqrt %38 : vector<1x256xf32>
      %c0_27 = arith.constant 0 : index
      %c0_28 = arith.constant 0 : index
      %40 = vector.load %arg6[%c0_27, %c0_28] : memref<1x256xf32, #tpu.memory_space<vmem>>, vector<1x256xf32>
      %41 = arith.mulf %40, %39 : vector<1x256xf32>
      %c0_29 = arith.constant 0 : index
      %c0_30 = arith.constant 0 : index
      %42 = vector.load %arg7[%c0_29, %c0_30] : memref<1x256xf32, #tpu.memory_space<vmem>>, vector<1x256xf32>
      %43 = arith.mulf %33, %41 : vector<1x256xf32>
      %44 = arith.subf %42, %43 : vector<1x256xf32>
      %c0_31 = arith.constant 0 : index
      %c0_32 = arith.constant 0 : index
      %45 = vector.load %arg8[%c0_31, %c0_32] : memref<64x256xf32, #tpu.memory_space<vmem>>, vector<64x256xf32>
      %46 = vector.broadcast %41 : vector<1x256xf32> to vector<64x256xf32>
      %47 = arith.mulf %45, %46 : vector<64x256xf32>
      %48 = vector.broadcast %44 : vector<1x256xf32> to vector<64x256xf32>
      %49 = arith.addf %47, %48 : vector<64x256xf32>
      %cst_33 = arith.constant 0.000000e+00 : f32
      %50 = vector.broadcast %cst_33 : f32 to vector<64x256xf32>
      %51 = arith.maximumf %49, %50 : vector<64x256xf32>
      %c0_34 = arith.constant 0 : index
      %c0_35 = arith.constant 0 : index
      %52 = vector.load %arg8[%c0_34, %c0_35] : memref<64x256xf32, #tpu.memory_space<vmem>>, vector<64x256xf32>
      tpu.vector_store %arg8[%c0_34, %c0_35], %51 {strides = array<i32>} : memref<64x256xf32, #tpu.memory_space<vmem>>, vector<64x256xf32>,
    } else {
    }
    return
  }
  func.func @transform_0(%arg0: i32) -> (i32, i32) {
    %c0_i32 = arith.constant 0 : i32
    %c0_i32_0 = arith.constant 0 : i32
    return %arg0, %c0_i32 : i32, i32
  }
  func.func @transform_1(%arg0: i32) -> (i32, i32) {
    %c0_i32 = arith.constant 0 : i32
    %c0_i32_0 = arith.constant 0 : i32
    %c0_i32_1 = arith.constant 0 : i32
    return %c0_i32, %c0_i32_0 : i32, i32
  }
  func.func @transform_2(%arg0: i32) -> (i32, i32) {
    %c0_i32 = arith.constant 0 : i32
    %c0_i32_0 = arith.constant 0 : i32
    %c0_i32_1 = arith.constant 0 : i32
    return %c0_i32, %c0_i32_0 : i32, i32
  }
  func.func @transform_3(%arg0: i32) -> (i32, i32) {
    %c0_i32 = arith.constant 0 : i32
    %c0_i32_0 = arith.constant 0 : i32
    %c0_i32_1 = arith.constant 0 : i32
    return %c0_i32, %c0_i32_0 : i32, i32
  }
  func.func @transform_4(%arg0: i32) -> (i32, i32) {
    %c0_i32 = arith.constant 0 : i32
    %c0_i32_0 = arith.constant 0 : i32
    %c0_i32_1 = arith.constant 0 : i32
    return %c0_i32, %c0_i32_0 : i32, i32
  }
  func.func @transform_5(%arg0: i32) -> (i32, i32) {
    %c0_i32 = arith.constant 0 : i32
    %c0_i32_0 = arith.constant 0 : i32
    %c0_i32_1 = arith.constant 0 : i32
    return %c0_i32, %c0_i32_0 : i32, i32
  }
  func.func @transform_6(%arg0: i32) -> (i32, i32) {
    %c0_i32 = arith.constant 0 : i32
    %c0_i32_0 = arith.constant 0 : i32
    %c0_i32_1 = arith.constant 0 : i32
    return %c0_i32, %c0_i32_0 : i32, i32
  }
  func.func @transform_7(%arg0: i32) -> (i32, i32) {
    %c0_i32 = arith.constant 0 : i32
    %c0_i32_0 = arith.constant 0 : i32
    %c0_i32_1 = arith.constant 0 : i32
    return %c0_i32, %c0_i32_0 : i32, i32
  }
}

</mosaic_0001>

<llo_original>
// kernel: tpu_custom_call.1
$region0: #{tpu_custom_call.1}
  #allocation0 [shape = 'u32[]', space=smem, size = 0x4, offset = 0x4, fixed_abs, tag = 'smem constant byte address 0x4 - core index']
  #allocation1 [shape = 'u32[144,128]{1,0:T(1,128)}', space=vmem, size = 0x12000, scoped, tag = 'internal scratch']
  #allocation2 [shape = 'f32[2,256]{1,0:T(2,128)}', space=vmem, size = 0x800, scoped, tag = 'scratch operand']
  %s0 = inlined_call_operand.vmem [shape: bf16[32,128], index: 0, kind: input, shape index: {}]
  %s1 = inlined_call_operand.hbm [shape: bf16[128,768], index: 1, kind: input, shape index: {}]
  %s2 = inlined_call_operand.vmem [shape: bf16[64,96], index: 2, kind: input, shape index: {}]
  %s3 = inlined_call_operand.vmem [shape: f32[256,8], index: 3, kind: input, shape index: {}]
  %s4 = inlined_call_operand.vmem [shape: f32[8,256], index: 4, kind: input, shape index: {}]
  %s5 = inlined_call_operand.vmem [shape: f32[1,256], index: 5, kind: input, shape index: {}]
  %s6 = inlined_call_operand.vmem [shape: f32[1,256], index: 6, kind: input, shape index: {}]
  %s7 = inlined_call_operand.hbm [shape: f32[64,256], index: 7, kind: output, shape index: {}]
  %s8 = sld [smem:[#allocation0]]
  $region50: #{tpu_custom_call.1} parent=0
    _
  %s10 = ssub.s32 1, %s8
  %s11 = scalar_select 0, %s10, %s8
  $region1: #{tpu_custom_call.1} parent=0
    #allocation3 [shape = 'u8[196608]{0}', space=vmem, size = 0x30000, scoped, tag = 'input window, operand 1, single buffered']
    #allocation4 [shape = 's32[1]{0}', space=sflag, size = 0x4, scoped, tag = 'scoped memory for tpu_custom_call.1']
    #allocation5 [shape = 's32[1]{0}', space=sflag, size = 0x4, scoped, tag = 'scoped memory for tpu_custom_call.1']
    #allocation6 [shape = 'u8[65536]{0}', space=vmem, size = 0x10000, scoped, tag = 'output window, operand 0, single buffered']
    %12 = vsyncpa [#allocation4], 0
    %13 = vsyncpa [#allocation5], 0
    // Predicated region
    $region2: #{tpu_custom_call.1} parent=1 // pred_check
      _
    $region3: #{tpu_custom_call.1} parent=1 // pred_check_branch
      %15 = sbr.rel (0) target = $region5
    $region4: #{tpu_custom_call.1} parent=1 // pred_region
      _
    $region5: #{tpu_custom_call.1} parent=1 // pred_fallthru
      _
    // Predicated region
    $region6: #{tpu_custom_call.1} parent=1 // pred_check
      _
    $region7: #{tpu_custom_call.1} parent=1 // pred_check_branch
      %17 = sbr.rel (0) target = $region9
    $region8: #{tpu_custom_call.1} parent=1 // pred_region
      %s19 = ssub.s32 6144, 6144
      %20 = vsyncadd [#allocation4], %s19
      %s21 = sshll.u32 [#allocation3], 4
      %s22 = int_to_ptr.vmem [resolvable:$true] %s21
      %27 = dma.hbm_to_vmem [thread:$0]  %s1, 6144, %s22, [#allocation4], 384, 384, 24
    $region9: #{tpu_custom_call.1} parent=1 // pred_fallthru
      _
    // Predicated region
    $region10: #{tpu_custom_call.1} parent=1 // pred_check
      _
    $region11: #{tpu_custom_call.1} parent=1 // pred_check_branch
      %29 = sbr.rel (0) target = $region13
    $region12: #{tpu_custom_call.1} parent=1 // pred_region
      _
    $region13: #{tpu_custom_call.1} parent=1 // pred_fallthru
      _
    // Predicated region
    $region14: #{tpu_custom_call.1} parent=1 // pred_check
      _
    $region15: #{tpu_custom_call.1} parent=1 // pred_check_branch
      %31 = sbr.rel (0) target = $region17
    $region16: #{tpu_custom_call.1} parent=1 // pred_region
      _
    $region17: #{tpu_custom_call.1} parent=1 // pred_fallthru
      _
    // Predicated region
    $region18: #{tpu_custom_call.1} parent=1 // pred_check
      _
    $region19: #{tpu_custom_call.1} parent=1 // pred_check_branch
      %33 = sbr.rel (0) target = $region21
    $region20: #{tpu_custom_call.1} parent=1 // pred_region
      _
    $region21: #{tpu_custom_call.1} parent=1 // pred_fallthru
      _
    // Predicated region
    $region22: #{tpu_custom_call.1} parent=1 // pred_check
      _
    $region23: #{tpu_custom_call.1} parent=1 // pred_check_branch
      %35 = sbr.rel (0) target = $region25
    $region24: #{tpu_custom_call.1} parent=1 // pred_region
      _
    $region25: #{tpu_custom_call.1} parent=1 // pred_fallthru
      _
    // Predicated region
    $region26: #{tpu_custom_call.1} parent=1 // pred_check
      _
    $region27: #{tpu_custom_call.1} parent=1 // pred_check_branch
      %37 = sbr.rel (0) target = $region29
    $region28: #{tpu_custom_call.1} parent=1 // pred_region
      _
    $region29: #{tpu_custom_call.1} parent=1 // pred_fallthru
      _
    // Predicated region
    $region30: #{tpu_custom_call.1} parent=1 // pred_check
      _
    $region31: #{tpu_custom_call.1} parent=1 // pred_check_branch
      %39 = sbr.rel (0) target = $region33
    $region32: #{tpu_custom_call.1} parent=1 // pred_region
      %40 = dma.done [#allocation4], 6144
    $region33: #{tpu_custom_call.1} parent=1 // pred_fallthru
      _
    %p42 = scmp.eq.s32.totalorder 0, 0
    // Predicated region
    $region34: #{tpu_custom_call.1} parent=1 // pred_check
      %p43 = pneg %p42
    $region35: #{tpu_custom_call.1} parent=1 // pred_check_branch
      %45 = sbr.rel (%p43) target = $region37
    $region36: #{tpu_custom_call.1} parent=1 // pred_region
      %46 = vst [vmem:[#allocation2] sm:$0xf] 0.0
    $region37: #{tpu_custom_call.1} parent=1 // pred_fallthru
      _
    %v47 = vld [vmem:[%s0] sm:$0xf]
    %v48 = vld [vmem:[%s0 + $0x4] sm:$0xf]
    %v49 = vld [vmem:[%s0 + $0x8] sm:$0xf]
    %v50 = vld [vmem:[%s0 + $0xc] sm:$0xf]
    %v51 = vld [vmem:[#allocation3] sm:$0xff]
    %v52 = vld [vmem:[#allocation3 + $0x8] sm:$0xff]
    %v53 = vld [vmem:[#allocation3 + $0x10] sm:$0xff]
    %v54 = vld [vmem:[#allocation3 + $0x18] sm:$0xff]
    %v55 = vld [vmem:[#allocation3 + $0x20] sm:$0xff]
    %v56 = vld [vmem:[#allocation3 + $0x28] sm:$0xff]
    %v57 = vld [vmem:[#allocation3 + $0x30] sm:$0xff]
    %v58 = vld [vmem:[#allocation3 + $0x38] sm:$0xff]
    %v59 = vld [vmem:[#allocation3 + $0x40] sm:$0xff]
    %v60 = vld [vmem:[#allocation3 + $0x48] sm:$0xff]
    %v61 = vld [vmem:[#allocation3 + $0x50] sm:$0xff]
    %v62 = vld [vmem:[#allocation3 + $0x58] sm:$0xff]
    %v63 = vld [vmem:[#allocation3 + $0x60] sm:$0xff]
    %v64 = vld [vmem:[#allocation3 + $0x68] sm:$0xff]
    %v65 = vld [vmem:[#allocation3 + $0x70] sm:$0xff]
    %v66 = vld [vmem:[#allocation3 + $0x78] sm:$0xff]
    %v67 = vld [vmem:[#allocation3 + $0x80] sm:$0xff]
    %v68 = vld [vmem:[#allocation3 + $0x88] sm:$0xff]
    %v69 = vld [vmem:[#allocation3 + $0x90] sm:$0xff]
    %v70 = vld [vmem:[#allocation3 + $0x98] sm:$0xff]
    %v71 = vld [vmem:[#allocation3 + $0xa0] sm:$0xff]
    %v72 = vld [vmem:[#allocation3 + $0xa8] sm:$0xff]
    %v73 = vld [vmem:[#allocation3 + $0xb0] sm:$0xff]
    %v74 = vld [vmem:[#allocation3 + $0xb8] sm:$0xff]
    %v75 = vld [vmem:[#allocation3 + $0xc0] sm:$0xff]
    %v76 = vld [vmem:[#allocation3 + $0xc8] sm:$0xff]
    %v77 = vld [vmem:[#allocation3 + $0xd0] sm:$0xff]
    %v78 = vld [vmem:[#allocation3 + $0xd8] sm:$0xff]
    %v79 = vld [vmem:[#allocation3 + $0xe0] sm:$0xff]
    %v80 = vld [vmem:[#allocation3 + $0xe8] sm:$0xff]
    %v81 = vld [vmem:[#allocation3 + $0xf0] sm:$0xff]
    %v82 = vld [vmem:[#allocation3 + $0xf8] sm:$0xff]
    %v83 = vld [vmem:[#allocation3 + $0x100] sm:$0xff]
    %v84 = vld [vmem:[#allocation3 + $0x108] sm:$0xff]
    %v85 = vld [vmem:[#allocation3 + $0x110] sm:$0xff]
    %v86 = vld [vmem:[#allocation3 + $0x118] sm:$0xff]
    %v87 = vld [vmem:[#allocation3 + $0x120] sm:$0xff]
    %v88 = vld [vmem:[#allocation3 + $0x128] sm:$0xff]
    %v89 = vld [vmem:[#allocation3 + $0x130] sm:$0xff]
    %v90 = vld [vmem:[#allocation3 + $0x138] sm:$0xff]
    %v91 = vld [vmem:[#allocation3 + $0x140] sm:$0xff]
    %v92 = vld [vmem:[#allocation3 + $0x148] sm:$0xff]
    %v93 = vld [vmem:[#allocation3 + $0x150] sm:$0xff]
    %v94 = vld [vmem:[#allocation3 + $0x158] sm:$0xff]
    %v95 = vld [vmem:[#allocation3 + $0x160] sm:$0xff]
    %v96 = vld [vmem:[#allocation3 + $0x168] sm:$0xff]
    %v97 = vld [vmem:[#allocation3 + $0x170] sm:$0xff]
    %v98 = vld [vmem:[#allocation3 + $0x178] sm:$0xff]
    %v103 = vunpack.c.l.b16 %v47
    %v104 = vunpack.c.l.b16 %v48
    %v105 = vunpack.c.l.b16 %v49
    %v106 = vunpack.c.l.b16 %v50
    %v107 = vpack.c.b16 %v104, %v103
    %v108 = vpack.c.b16 %v106, %v105
    %v159 = vunpack.c.l.b16 %v51
    %v160 = vunpack.c.h.b16 %v51
    %v161 = vunpack.c.l.b16 %v52
    %v162 = vunpack.c.h.b16 %v52
    %v163 = vunpack.c.l.b16 %v53
    %v164 = vunpack.c.h.b16 %v53
    %v165 = vunpack.c.l.b16 %v54
    %v166 = vunpack.c.h.b16 %v54
    %v167 = vunpack.c.l.b16 %v55
    %v168 = vunpack.c.h.b16 %v55
    %v169 = vunpack.c.l.b16 %v56
    %v170 = vunpack.c.h.b16 %v56
    %v171 = vunpack.c.l.b16 %v57
    %v172 = vunpack.c.h.b16 %v57
    %v173 = vunpack.c.l.b16 %v58
    %v174 = vunpack.c.h.b16 %v58
    %v175 = vunpack.c.l.b16 %v59
    %v176 = vunpack.c.h.b16 %v59
    %v177 = vunpack.c.l.b16 %v60
    %v178 = vunpack.c.h.b16 %v60
    %v179 = vunpack.c.l.b16 %v61
    %v180 = vunpack.c.h.b16 %v61
    %v181 = vunpack.c.l.b16 %v62
    %v182 = vunpack.c.h.b16 %v62
    %v183 = vunpack.c.l.b16 %v63
    %v184 = vunpack.c.h.b16 %v63
    %v185 = vunpack.c.l.b16 %v64
    %v186 = vunpack.c.h.b16 %v64
    %v187 = vunpack.c.l.b16 %v65
    %v188 = vunpack.c.h.b16 %v65
    %v189 = vunpack.c.l.b16 %v66
    %v190 = vunpack.c.h.b16 %v66
    %v191 = vunpack.c.l.b16 %v67
    %v192 = vunpack.c.h.b16 %v67
    %v193 = vunpack.c.l.b16 %v68
    %v194 = vunpack.c.h.b16 %v68
    %v195 = vunpack.c.l.b16 %v69
    %v196 = vunpack.c.h.b16 %v69
    %v197 = vunpack.c.l.b16 %v70
    %v198 = vunpack.c.h.b16 %v70
    %v199 = vunpack.c.l.b16 %v71
    %v200 = vunpack.c.h.b16 %v71
    %v201 = vunpack.c.l.b16 %v72
    %v202 = vunpack.c.h.b16 %v72
    %v203 = vunpack.c.l.b16 %v73
    %v204 = vunpack.c.h.b16 %v73
    %v205 = vunpack.c.l.b16 %v74
    %v206 = vunpack.c.h.b16 %v74
    %v207 = vunpack.c.l.b16 %v75
    %v208 = vunpack.c.h.b16 %v75
    %v209 = vunpack.c.l.b16 %v76
    %v210 = vunpack.c.h.b16 %v76
    %v211 = vunpack.c.l.b16 %v77
    %v212 = vunpack.c.h.b16 %v77
    %v213 = vunpack.c.l.b16 %v78
    %v214 = vunpack.c.h.b16 %v78
    %v215 = vunpack.c.l.b16 %v79
    %v216 = vunpack.c.h.b16 %v79
    %v217 = vunpack.c.l.b16 %v80
    %v218 = vunpack.c.h.b16 %v80
    %v219 = vunpack.c.l.b16 %v81
    %v220 = vunpack.c.h.b16 %v81
    %v221 = vunpack.c.l.b16 %v82
    %v222 = vunpack.c.h.b16 %v82
    %v223 = vunpack.c.l.b16 %v83
    %v224 = vunpack.c.h.b16 %v83
    %v225 = vunpack.c.l.b16 %v84
    %v226 = vunpack.c.h.b16 %v84
    %v227 = vunpack.c.l.b16 %v85
    %v228 = vunpack.c.h.b16 %v85
    %v229 = vunpack.c.l.b16 %v86
    %v230 = vunpack.c.h.b16 %v86
    %v231 = vunpack.c.l.b16 %v87
    %v232 = vunpack.c.h.b16 %v87
    %v233 = vunpack.c.l.b16 %v88
    %v234 = vunpack.c.h.b16 %v88
    %v235 = vunpack.c.l.b16 %v89
    %v236 = vunpack.c.h.b16 %v89
    %v237 = vunpack.c.l.b16 %v90
    %v238 = vunpack.c.h.b16 %v90
    %v239 = vunpack.c.l.b16 %v91
    %v240 = vunpack.c.h.b16 %v91
    %v241 = vunpack.c.l.b16 %v92
    %v242 = vunpack.c.h.b16 %v92
    %v243 = vunpack.c.l.b16 %v93
    %v244 = vunpack.c.h.b16 %v93
    %v245 = vunpack.c.l.b16 %v94
    %v246 = vunpack.c.h.b16 %v94
    %v247 = vunpack.c.l.b16 %v95
    %v248 = vunpack.c.h.b16 %v95
    %v249 = vunpack.c.l.b16 %v96
    %v250 = vunpack.c.h.b16 %v96
    %v251 = vunpack.c.l.b16 %v97
    %v252 = vunpack.c.h.b16 %v97
    %v253 = vunpack.c.l.b16 %v98
    %v254 = vunpack.c.h.b16 %v98
    %v255 = vpack.c.b16 %v165, %v159
    %v256 = vpack.c.b16 %v166, %v160
    %v257 = vpack.c.b16 %v167, %v161
    %v258 = vpack.c.b16 %v168, %v162
    %v259 = vpack.c.b16 %v169, %v163
    %v260 = vpack.c.b16 %v170, %v164
    %v261 = vpack.c.b16 %v177, %v171
    %v262 = vpack.c.b16 %v178, %v172
    %v263 = vpack.c.b16 %v179, %v173
    %v264 = vpack.c.b16 %v180, %v174
    %v265 = vpack.c.b16 %v181, %v175
    %v266 = vpack.c.b16 %v182, %v176
    %v267 = vpack.c.b16 %v189, %v183
    %v268 = vpack.c.b16 %v190, %v184
    %v269 = vpack.c.b16 %v191, %v185
    %v270 = vpack.c.b16 %v192, %v186
    %v271 = vpack.c.b16 %v193, %v187
    %v272 = vpack.c.b16 %v194, %v188
    %v273 = vpack.c.b16 %v201, %v195
    %v274 = vpack.c.b16 %v202, %v196
    %v275 = vpack.c.b16 %v203, %v197
    %v276 = vpack.c.b16 %v204, %v198
    %v277 = vpack.c.b16 %v205, %v199
    %v278 = vpack.c.b16 %v206, %v200
    %v279 = vpack.c.b16 %v213, %v207
    %v280 = vpack.c.b16 %v214, %v208
    %v281 = vpack.c.b16 %v215, %v209
    %v282 = vpack.c.b16 %v216, %v210
    %v283 = vpack.c.b16 %v217, %v211
    %v284 = vpack.c.b16 %v218, %v212
    %v285 = vpack.c.b16 %v225, %v219
    %v286 = vpack.c.b16 %v226, %v220
    %v287 = vpack.c.b16 %v227, %v221
    %v288 = vpack.c.b16 %v228, %v222
    %v289 = vpack.c.b16 %v229, %v223
    %v290 = vpack.c.b16 %v230, %v224
    %v291 = vpack.c.b16 %v237, %v231
    %v292 = vpack.c.b16 %v238, %v232
    %v293 = vpack.c.b16 %v239, %v233
    %v294 = vpack.c.b16 %v240, %v234
    %v295 = vpack.c.b16 %v241, %v235
    %v296 = vpack.c.b16 %v242, %v236
    %v297 = vpack.c.b16 %v249, %v243
    %v298 = vpack.c.b16 %v250, %v244
    %v299 = vpack.c.b16 %v251, %v245
    %v300 = vpack.c.b16 %v252, %v246
    %v301 = vpack.c.b16 %v253, %v247
    %v302 = vpack.c.b16 %v254, %v248
    %351 = vmatprep.subr.bf16.mxu0 %v298
    %352 = vmatpush1.bf16.msra.mxu0 %v297
    %353 = vmatprep.subr.bf16.mxu0 %v292
    %354 = vmatpush1.bf16.msra.mxu0 %v291
    %355 = vmatprep.subr.bf16.mxu0 %v286
    %356 = vmatpush1.bf16.msra.mxu0 %v285
    %357 = vmatprep.subr.bf16.mxu0 %v280
    %358 = vmatpush1.bf16.msra.mxu0 %v279
    %359 = vmatprep.subr.bf16.mxu0 %v274
    %360 = vmatpush1.bf16.msra.mxu0 %v273
    %361 = vmatprep.subr.bf16.mxu0 %v268
    %362 = vmatpush1.bf16.msra.mxu0 %v267
    %363 = vmatprep.subr.bf16.mxu0 %v262
    %364 = vmatpush1.bf16.msra.mxu0 %v261
    %365 = vmatprep.subr.bf16.mxu0 %v256
    %366 = vmatpush1.bf16.msra.mxu0 %v255
    %367 = vmatprep.subr.bf16.mxu0 0
    %368 = vmatpush2.bf16.msra.mxu0 0
    %369 = vmatprep.subr.bf16.mxu0 0
    %370 = vmatpush2.bf16.msra.mxu0 0
    %371 = vmatprep.subr.bf16.mxu0 0
    %372 = vmatpush2.bf16.msra.mxu0 0
    %373 = vmatprep.subr.bf16.mxu0 0
    %374 = vmatpush2.bf16.msra.mxu0 0
    %375 = vmatprep.subr.bf16.mxu0 0
    %376 = vmatpush2.bf16.msra.mxu0 0
    %377 = vmatprep.subr.bf16.mxu0 0
    %378 = vmatpush2.bf16.msra.mxu0 0
    %379 = vmatprep.subr.bf16.mxu0 0
    %380 = vmatpush2.bf16.msra.mxu0 0
    %381 = vmatprep.subr.bf16.mxu0 0
    %382 = vmatpush2.bf16.msra.mxu0 0
    %383 = vmatprep.mubr.bf16.mxu0 0
    %384 = vmatmul.mubr.bf16.gmra.mxu0 %v107
    %v385 = vpop.f32.mrf.mxu0
    %v386 = vadd.f32 0.0, %v385
    %v387 = vpop.f32.mrf.mxu0
    %v388 = vadd.f32 0.0, %v387
    %v389 = vpop.f32.mrf.mxu0
    %v390 = vadd.f32 0.0, %v389
    %v391 = vpop.f32.mrf.mxu0
    %v392 = vadd.f32 0.0, %v391
    %393 = vmatprep.mubr.bf16.mxu0 0
    %394 = vmatmul.mubr.bf16.gmra.mxu0 %v108
    %v395 = vpop.f32.mrf.mxu0
    %v396 = vadd.f32 0.0, %v395
    %v397 = vpop.f32.mrf.mxu0
    %v398 = vadd.f32 0.0, %v397
    %v399 = vpop.f32.mrf.mxu0
    %v400 = vadd.f32 0.0, %v399
    %v401 = vpop.f32.mrf.mxu0
    %v402 = vadd.f32 0.0, %v401
    %403 = vdwg.mxu0
    %404 = vmatprep.subr.bf16.mxu0 %v300
    %405 = vmatpush1.bf16.msra.mxu0 %v299
    %406 = vmatprep.subr.bf16.mxu0 %v294
    %407 = vmatpush1.bf16.msra.mxu0 %v293
    %408 = vmatprep.subr.bf16.mxu0 %v288
    %409 = vmatpush1.bf16.msra.mxu0 %v287
    %410 = vmatprep.subr.bf16.mxu0 %v282
    %411 = vmatpush1.bf16.msra.mxu0 %v281
    %412 = vmatprep.subr.bf16.mxu0 %v276
    %413 = vmatpush1.bf16.msra.mxu0 %v275
    %414 = vmatprep.subr.bf16.mxu0 %v270
    %415 = vmatpush1.bf16.msra.mxu0 %v269
    %416 = vmatprep.subr.bf16.mxu0 %v264
    %417 = vmatpush1.bf16.msra.mxu0 %v263
    %418 = vmatprep.subr.bf16.mxu0 %v258
    %419 = vmatpush1.bf16.msra.mxu0 %v257
    %420 = vmatprep.subr.bf16.mxu0 0
    %421 = vmatpush2.bf16.msra.mxu0 0
    %422 = vmatprep.subr.bf16.mxu0 0
    %423 = vmatpush2.bf16.msra.mxu0 0
    %424 = vmatprep.subr.bf16.mxu0 0
    %425 = vmatpush2.bf16.msra.mxu0 0
    %426 = vmatprep.subr.bf16.mxu0 0
    %427 = vmatpush2.bf16.msra.mxu0 0
    %428 = vmatprep.subr.bf16.mxu0 0
    %429 = vmatpush2.bf16.msra.mxu0 0
    %430 = vmatprep.subr.bf16.mxu0 0
    %431 = vmatpush2.bf16.msra.mxu0 0
    %432 = vmatprep.subr.bf16.mxu0 0
    %433 = vmatpush2.bf16.msra.mxu0 0
    %434 = vmatprep.subr.bf16.mxu0 0
    %435 = vmatpush2.bf16.msra.mxu0 0
    %436 = vmatprep.mubr.bf16.mxu0 0
    %437 = vmatmul.mubr.bf16.gmra.mxu0 %v107
    %v438 = vpop.f32.mrf.mxu0
    %v439 = vadd.f32 0.0, %v438
    %v440 = vpop.f32.mrf.mxu0
    %v441 = vadd.f32 0.0, %v440
    %v442 = vpop.f32.mrf.mxu0
    %v443 = vadd.f32 0.0, %v442
    %v444 = vpop.f32.mrf.mxu0
    %v445 = vadd.f32 0.0, %v444
    %446 = vmatprep.mubr.bf16.mxu0 0
    %447 = vmatmul.mubr.bf16.gmra.mxu0 %v108
    %v448 = vpop.f32.mrf.mxu0
    %v449 = vadd.f32 0.0, %v448
    %v450 = vpop.f32.mrf.mxu0
    %v451 = vadd.f32 0.0, %v450
    %v452 = vpop.f32.mrf.mxu0
    %v453 = vadd.f32 0.0, %v452
    %v454 = vpop.f32.mrf.mxu0
    %v455 = vadd.f32 0.0, %v454
    %456 = vdwg.mxu0
    %457 = vmatprep.subr.bf16.mxu0 %v302
    %458 = vmatpush1.bf16.msra.mxu0 %v301
    %459 = vmatprep.subr.bf16.mxu0 %v296
    %460 = vmatpush1.bf16.msra.mxu0 %v295
    %461 = vmatprep.subr.bf16.mxu0 %v290
    %462 = vmatpush1.bf16.msra.mxu0 %v289
    %463 = vmatprep.subr.bf16.mxu0 %v284
    %464 = vmatpush1.bf16.msra.mxu0 %v283
    %465 = vmatprep.subr.bf16.mxu0 %v278
    %466 = vmatpush1.bf16.msra.mxu0 %v277
    %467 = vmatprep.subr.bf16.mxu0 %v272
    %468 = vmatpush1.bf16.msra.mxu0 %v271
    %469 = vmatprep.subr.bf16.mxu0 %v266
    %470 = vmatpush1.bf16.msra.mxu0 %v265
    %471 = vmatprep.subr.bf16.mxu0 %v260
    %472 = vmatpush1.bf16.msra.mxu0 %v259
    %473 = vmatprep.subr.bf16.mxu0 0
    %474 = vmatpush2.bf16.msra.mxu0 0
    %475 = vmatprep.subr.bf16.mxu0 0
    %476 = vmatpush2.bf16.msra.mxu0 0
    %477 = vmatprep.subr.bf16.mxu0 0
    %478 = vmatpush2.bf16.msra.mxu0 0
    %479 = vmatprep.subr.bf16.mxu0 0
    %480 = vmatpush2.bf16.msra.mxu0 0
    %481 = vmatprep.subr.bf16.mxu0 0
    %482 = vmatpush2.bf16.msra.mxu0 0
    %483 = vmatprep.subr.bf16.mxu0 0
    %484 = vmatpush2.bf16.msra.mxu0 0
    %485 = vmatprep.subr.bf16.mxu0 0
    %486 = vmatpush2.bf16.msra.mxu0 0
    %487 = vmatprep.subr.bf16.mxu0 0
    %488 = vmatpush2.bf16.msra.mxu0 0
    %489 = vmatprep.mubr.bf16.mxu0 0
    %490 = vmatmul.mubr.bf16.gmra.mxu0 %v107
    %v491 = vpop.f32.mrf.mxu0
    %v492 = vadd.f32 0.0, %v491
    %v493 = vpop.f32.mrf.mxu0
    %v494 = vadd.f32 0.0, %v493
    %v495 = vpop.f32.mrf.mxu0
    %v496 = vadd.f32 0.0, %v495
    %v497 = vpop.f32.mrf.mxu0
    %v498 = vadd.f32 0.0, %v497
    %499 = vmatprep.mubr.bf16.mxu0 0
    %500 = vmatmul.mubr.bf16.gmra.mxu0 %v108
    %v501 = vpop.f32.mrf.mxu0
    %v502 = vadd.f32 0.0, %v501
    %v503 = vpop.f32.mrf.mxu0
    %v504 = vadd.f32 0.0, %v503
    %v505 = vpop.f32.mrf.mxu0
    %v506 = vadd.f32 0.0, %v505
    %v507 = vpop.f32.mrf.mxu0
    %v508 = vadd.f32 0.0, %v507
    %509 = vdwg.mxu0
    %v510 = vpack.c.bf16 %v390, %v386
    %v511 = vpack.c.bf16 %v392, %v388
    %v512 = vpack.c.bf16 %v443, %v439
    %v513 = vpack.c.bf16 %v445, %v441
    %v514 = vpack.c.bf16 %v496, %v492
    %v515 = vpack.c.bf16 %v498, %v494
    %v516 = vpack.c.bf16 %v400, %v396
    %v517 = vpack.c.bf16 %v402, %v398
    %v518 = vpack.c.bf16 %v453, %v449
    %v519 = vpack.c.bf16 %v455, %v451
    %v520 = vpack.c.bf16 %v506, %v502
    %v521 = vpack.c.bf16 %v508, %v504
    %v522 = vld [vmem:[%s2] sm:$0xf]
    %v523 = vld [vmem:[%s2 + $0x4] sm:$0xf]
    %v524 = vld [vmem:[%s2 + $0x8] sm:$0xf]
    %v525 = vld [vmem:[%s2 + $0xc] sm:$0xf]
    %v526 = vld [vmem:[%s2 + $0x10] sm:$0xf]
    %v527 = vld [vmem:[%s2 + $0x14] sm:$0xf]
    %v528 = vld [vmem:[%s2 + $0x18] sm:$0xf]
    %v529 = vld [vmem:[%s2 + $0x1c] sm:$0xf]
    %v538 = vunpack.c.l.b16 %v522
    %v539 = vunpack.c.l.b16 %v523
    %v540 = vunpack.c.l.b16 %v524
    %v541 = vunpack.c.l.b16 %v525
    %v542 = vunpack.c.l.b16 %v526
    %v543 = vunpack.c.l.b16 %v527
    %v544 = vunpack.c.l.b16 %v528
    %v545 = vunpack.c.l.b16 %v529
    %v546 = vpack.c.b16 %v539, %v538
    %v547 = vpack.c.b16 %v541, %v540
    %v548 = vpack.c.b16 %v543, %v542
    %v549 = vpack.c.b16 %v545, %v544
    %vm550 = vcmask 785408
    %v552 = vsel %vm550, %v546, 0
    %v555 = vsel %vm550, %v547, 0
    %v558 = vsel %vm550, %v548, 0
    %v561 = vsel %vm550, %v549, 0
    %563 = vmatprep.subr.bf16.mxu0 0
    %564 = vmatpush1.bf16.msra.mxu0 0
    %565 = vmatprep.subr.bf16.mxu0 0
    %566 = vmatpush1.bf16.msra.mxu0 0
    %567 = vmatprep.subr.bf16.mxu0 %v521
    %568 = vmatpush1.bf16.msra.mxu0 %v520
    %569 = vmatprep.subr.bf16.mxu0 %v515
    %570 = vmatpush1.bf16.msra.mxu0 %v514
    %571 = vmatprep.subr.bf16.mxu0 %v519
    %572 = vmatpush1.bf16.msra.mxu0 %v518
    %573 = vmatprep.subr.bf16.mxu0 %v513
    %574 = vmatpush1.bf16.msra.mxu0 %v512
    %575 = vmatprep.subr.bf16.mxu0 %v517
    %576 = vmatpush1.bf16.msra.mxu0 %v516
    %577 = vmatprep.subr.bf16.mxu0 %v511
    %578 = vmatpush1.bf16.msra.mxu0 %v510
    %579 = vmatprep.subr.bf16.mxu0 0
    %580 = vmatpush2.bf16.msra.mxu0 0
    %581 = vmatprep.subr.bf16.mxu0 0
    %582 = vmatpush2.bf16.msra.mxu0 0
    %583 = vmatprep.subr.bf16.mxu0 0
    %584 = vmatpush2.bf16.msra.mxu0 0
    %585 = vmatprep.subr.bf16.mxu0 0
    %586 = vmatpush2.bf16.msra.mxu0 0
    %587 = vmatprep.subr.bf16.mxu0 0
    %588 = vmatpush2.bf16.msra.mxu0 0
    %589 = vmatprep.subr.bf16.mxu0 0
    %590 = vmatpush2.bf16.msra.mxu0 0
    %591 = vmatprep.subr.bf16.mxu0 0
    %592 = vmatpush2.bf16.msra.mxu0 0
    %593 = vmatprep.subr.bf16.mxu0 0
    %594 = vmatpush2.bf16.msra.mxu0 0
    %595 = vmatprep.mubr.bf16.mxu0 0
    %596 = vmatmul.mubr.bf16.gmra.mxu0 %v552
    %v597 = vpop.f32.mrf.mxu0
    %v598 = vadd.f32 0.0, %v597
    %v599 = vpop.f32.mrf.mxu0
    %v600 = vadd.f32 0.0, %v599
    %v601 = vpop.f32.mrf.mxu0
    %v602 = vadd.f32 0.0, %v601
    %v603 = vpop.f32.mrf.mxu0
    %v604 = vadd.f32 0.0, %v603
    %605 = vmatprep.mubr.bf16.mxu0 0
    %606 = vmatmul.mubr.bf16.gmra.mxu0 %v555
    %v607 = vpop.f32.mrf.mxu0
    %v608 = vadd.f32 0.0, %v607
    %v609 = vpop.f32.mrf.mxu0
    %v610 = vadd.f32 0.0, %v609
    %v611 = vpop.f32.mrf.mxu0
    %v612 = vadd.f32 0.0, %v611
    %v613 = vpop.f32.mrf.mxu0
    %v614 = vadd.f32 0.0, %v613
    %615 = vmatprep.mubr.bf16.mxu0 0
    %616 = vmatmul.mubr.bf16.gmra.mxu0 %v558
    %v617 = vpop.f32.mrf.mxu0
    %v618 = vadd.f32 0.0, %v617
    %v619 = vpop.f32.mrf.mxu0
    %v620 = vadd.f32 0.0, %v619
    %v621 = vpop.f32.mrf.mxu0
    %v622 = vadd.f32 0.0, %v621
    %v623 = vpop.f32.mrf.mxu0
    %v624 = vadd.f32 0.0, %v623
    %625 = vmatprep.mubr.bf16.mxu0 0
    %626 = vmatmul.mubr.bf16.gmra.mxu0 %v561
    %v627 = vpop.f32.mrf.mxu0
    %v628 = vadd.f32 0.0, %v627
    %v629 = vpop.f32.mrf.mxu0
    %v630 = vadd.f32 0.0, %v629
    %v631 = vpop.f32.mrf.mxu0
    %v632 = vadd.f32 0.0, %v631
    %v633 = vpop.f32.mrf.mxu0
    %v634 = vadd.f32 0.0, %v633
    %635 = vdwg.mxu0
    %636 = vst [vmem:[#allocation6] sm:$0xff] %v598
    %637 = vst [vmem:[#allocation6 + $0x8] sm:$0xff] %v600
    %638 = vst [vmem:[#allocation6 + $0x10] sm:$0xff] %v602
    %639 = vst [vmem:[#allocation6 + $0x18] sm:$0xff] %v604
    %640 = vst [vmem:[#allocation6 + $0x20] sm:$0xff] %v608
    %641 = vst [vmem:[#allocation6 + $0x28] sm:$0xff] %v610
    %642 = vst [vmem:[#allocation6 + $0x30] sm:$0xff] %v612
    %643 = vst [vmem:[#allocation6 + $0x38] sm:$0xff] %v614
    %644 = vst [vmem:[#allocation6 + $0x40] sm:$0xff] %v618
    %645 = vst [vmem:[#allocation6 + $0x48] sm:$0xff] %v620
    %646 = vst [vmem:[#allocation6 + $0x50] sm:$0xff] %v622
    %647 = vst [vmem:[#allocation6 + $0x58] sm:$0xff] %v624
    %648 = vst [vmem:[#allocation6 + $0x60] sm:$0xff] %v628
    %649 = vst [vmem:[#allocation6 + $0x68] sm:$0xff] %v630
    %650 = vst [vmem:[#allocation6 + $0x70] sm:$0xff] %v632
    %651 = vst [vmem:[#allocation6 + $0x78] sm:$0xff] %v634
    %v652 = vadd.f32 %v598, %v602
    %v653 = vadd.f32 %v652, %v608
    %v654 = vadd.f32 %v653, %v612
    %v655 = vadd.f32 %v654, %v618
    %v656 = vadd.f32 %v655, %v622
    %v657 = vadd.f32 %v656, %v628
    %v658 = vadd.f32 %v657, %v632
    %v659 = vrot.slane %v658, 4
    %v660 = vadd.f32 %v658, %v659
    %v661 = vrot.slane %v660, 2
    %v662 = vadd.f32 %v660, %v661
    %v663 = vrot.slane %v662, 1
    %v664 = vadd.f32 %v662, %v663
    %v665 = vadd.f32 %v600, %v604
    %v666 = vadd.f32 %v665, %v610
    %v667 = vadd.f32 %v666, %v614
    %v668 = vadd.f32 %v667, %v620
    %v669 = vadd.f32 %v668, %v624
    %v670 = vadd.f32 %v669, %v630
    %v671 = vadd.f32 %v670, %v634
    %v672 = vrot.slane %v671, 4
    %v673 = vadd.f32 %v671, %v672
    %v674 = vrot.slane %v673, 2
    %v675 = vadd.f32 %v673, %v674
    %v676 = vrot.slane %v675, 1
    %v677 = vadd.f32 %v675, %v676
    %v678 = vmul.f32 %v598, %v598
    %v679 = vmul.f32 %v600, %v600
    %v680 = vmul.f32 %v602, %v602
    %v681 = vmul.f32 %v604, %v604
    %v682 = vmul.f32 %v608, %v608
    %v683 = vmul.f32 %v610, %v610
    %v684 = vmul.f32 %v612, %v612
    %v685 = vmul.f32 %v614, %v614
    %v686 = vmul.f32 %v618, %v618
    %v687 = vmul.f32 %v620, %v620
    %v688 = vmul.f32 %v622, %v622
    %v689 = vmul.f32 %v624, %v624
    %v690 = vmul.f32 %v628, %v628
    %v691 = vmul.f32 %v630, %v630
    %v692 = vmul.f32 %v632, %v632
    %v693 = vmul.f32 %v634, %v634
    %v694 = vadd.f32 %v678, %v680
    %v695 = vadd.f32 %v694, %v682
    %v696 = vadd.f32 %v695, %v684
    %v697 = vadd.f32 %v696, %v686
    %v698 = vadd.f32 %v697, %v688
    %v699 = vadd.f32 %v698, %v690
    %v700 = vadd.f32 %v699, %v692
    %v701 = vrot.slane %v700, 4
    %v702 = vadd.f32 %v700, %v701
    %v703 = vrot.slane %v702, 2
    %v704 = vadd.f32 %v702, %v703
    %v705 = vrot.slane %v704, 1
    %v706 = vadd.f32 %v704, %v705
    %v707 = vadd.f32 %v679, %v681
    %v708 = vadd.f32 %v707, %v683
    %v709 = vadd.f32 %v708, %v685
    %v710 = vadd.f32 %v709, %v687
    %v711 = vadd.f32 %v710, %v689
    %v712 = vadd.f32 %v711, %v691
    %v713 = vadd.f32 %v712, %v693
    %v714 = vrot.slane %v713, 4
    %v715 = vadd.f32 %v713, %v714
    %v716 = vrot.slane %v715, 2
    %v717 = vadd.f32 %v715, %v716
    %v718 = vrot.slane %v717, 1
    %v719 = vadd.f32 %v717, %v718
    %v720 = vld [vmem:[#allocation2] sm:$0xf]
    %vm721 = vcmask 1040384
    %v722 = vsel %vm721, %v664, %v706
    %v723 = vsel %vm721, %v677, %v719
    %v726 = vcombine.low %v722, %v723
    %v728 = vunpack.c.l.s4 1983009808
    %v729 = vunpack.c.0.s8 %v728
    %v730 = vlaneseq
    %v731 = vshrl.u32 %v730, 7
    %v732 = vsub.s32 %v729, %v731
    %v733 = vrot.slane %v726, %v732
    %v735 = vadd.f32 %v720, %v733
    %736 = vst [vmem:[#allocation2] sm:$0xf] %v735
    // Predicated region
    $region38: #{tpu_custom_call.1} parent=1 // pred_check
      %p737 = pneg %p42
    $region39: #{tpu_custom_call.1} parent=1 // pred_check_branch
      %739 = sbr.rel (%p737) target = $region41
    $region40: #{tpu_custom_call.1} parent=1 // pred_region
      %v740 = vld [vmem:[#allocation2] sm:$0xf]
      %v741 = vld [vmem:[%s3] sm:$0xff]
      %v742 = vld [vmem:[%s3 + $0x8] sm:$0xff]
      %v743 = vld [vmem:[%s3 + $0x10] sm:$0xff]
      %v744 = vld [vmem:[%s3 + $0x18] sm:$0xff]
      %v745 = vld [vmem:[%s3 + $0x20] sm:$0xff]
      %v746 = vld [vmem:[%s3 + $0x28] sm:$0xff]
      %v747 = vld [vmem:[%s3 + $0x30] sm:$0xff]
      %v748 = vld [vmem:[%s3 + $0x38] sm:$0xff]
      %v749 = vld [vmem:[%s3 + $0x40] sm:$0xff]
      %v750 = vld [vmem:[%s3 + $0x48] sm:$0xff]
      %v751 = vld [vmem:[%s3 + $0x50] sm:$0xff]
      %v752 = vld [vmem:[%s3 + $0x58] sm:$0xff]
      %v753 = vld [vmem:[%s3 + $0x60] sm:$0xff]
      %v754 = vld [vmem:[%s3 + $0x68] sm:$0xff]
      %v755 = vld [vmem:[%s3 + $0x70] sm:$0xff]
      %v756 = vld [vmem:[%s3 + $0x78] sm:$0xff]
      %v757 = vld [vmem:[%s3 + $0x80] sm:$0xff]
      %v758 = vld [vmem:[%s3 + $0x88] sm:$0xff]
      %v759 = vld [vmem:[%s3 + $0x90] sm:$0xff]
      %v760 = vld [vmem:[%s3 + $0x98] sm:$0xff]
      %v761 = vld [vmem:[%s3 + $0xa0] sm:$0xff]
      %v762 = vld [vmem:[%s3 + $0xa8] sm:$0xff]
      %v763 = vld [vmem:[%s3 + $0xb0] sm:$0xff]
      %v764 = vld [vmem:[%s3 + $0xb8] sm:$0xff]
      %v765 = vld [vmem:[%s3 + $0xc0] sm:$0xff]
      %v766 = vld [vmem:[%s3 + $0xc8] sm:$0xff]
      %v767 = vld [vmem:[%s3 + $0xd0] sm:$0xff]
      %v768 = vld [vmem:[%s3 + $0xd8] sm:$0xff]
      %v769 = vld [vmem:[%s3 + $0xe0] sm:$0xff]
      %v770 = vld [vmem:[%s3 + $0xe8] sm:$0xff]
      %v771 = vld [vmem:[%s3 + $0xf0] sm:$0xff]
      %v772 = vld [vmem:[%s3 + $0xf8] sm:$0xff]
      %v775 = vunpack.c.l.s4 1983009808
      %v776 = vunpack.c.0.s8 %v775
      %v777 = vlaneseq
      %v778 = vshrl.u32 %v777, 7
      %v779 = vsub.s32 %v776, %v778
      %v780 = vrot.slane %v740, %v779
      %v781 = vcombine.high %v780, %v780
      %784 = vmatprep.subr.mxu0 0.0
      %785 = vmatpush1.msra.mxu0 %v756
      %786 = vmatprep.subr.mxu0 0.0
      %787 = vmatpush1.msra.mxu0 %v755
      %788 = vmatprep.subr.mxu0 0.0
      %789 = vmatpush1.msra.mxu0 %v754
      %790 = vmatprep.subr.mxu0 0.0
      %791 = vmatpush1.msra.mxu0 %v753
      %792 = vmatprep.subr.mxu0 0.0
      %793 = vmatpush1.msra.mxu0 %v752
      %794 = vmatprep.subr.mxu0 0.0
      %795 = vmatpush1.msra.mxu0 %v751
      %796 = vmatprep.subr.mxu0 0.0
      %797 = vmatpush1.msra.mxu0 %v750
      %798 = vmatprep.subr.mxu0 0.0
      %799 = vmatpush1.msra.mxu0 %v749
      %800 = vmatprep.subr.mxu0 0.0
      %801 = vmatpush1.msra.mxu0 %v748
      %802 = vmatprep.subr.mxu0 0.0
      %803 = vmatpush1.msra.mxu0 %v747
      %804 = vmatprep.subr.mxu0 0.0
      %805 = vmatpush1.msra.mxu0 %v746
      %806 = vmatprep.subr.mxu0 0.0
      %807 = vmatpush1.msra.mxu0 %v745
      %808 = vmatprep.subr.mxu0 0.0
      %809 = vmatpush1.msra.mxu0 %v744
      %810 = vmatprep.subr.mxu0 0.0
      %811 = vmatpush1.msra.mxu0 %v743
      %812 = vmatprep.subr.mxu0 0.0
      %813 = vmatpush1.msra.mxu0 %v742
      %814 = vmatprep.subr.mxu0 0.0
      %815 = vmatpush1.msra.mxu0 %v741
      %816 = vmatprep.subr.mxu0 0.0
      %817 = vmatpush2.msra.mxu0 %v772
      %818 = vmatprep.subr.mxu0 0.0
      %819 = vmatpush2.msra.mxu0 %v771
      %820 = vmatprep.subr.mxu0 0.0
      %821 = vmatpush2.msra.mxu0 %v770
      %822 = vmatprep.subr.mxu0 0.0
      %823 = vmatpush2.msra.mxu0 %v769
      %824 = vmatprep.subr.mxu0 0.0
      %825 = vmatpush2.msra.mxu0 %v768
      %826 = vmatprep.subr.mxu0 0.0
      %827 = vmatpush2.msra.mxu0 %v767
      %828 = vmatprep.subr.mxu0 0.0
      %829 = vmatpush2.msra.mxu0 %v766
      %830 = vmatprep.subr.mxu0 0.0
      %831 = vmatpush2.msra.mxu0 %v765
      %832 = vmatprep.subr.mxu0 0.0
      %833 = vmatpush2.msra.mxu0 %v764
      %834 = vmatprep.subr.mxu0 0.0
      %835 = vmatpush2.msra.mxu0 %v763
      %836 = vmatprep.subr.mxu0 0.0
      %837 = vmatpush2.msra.mxu0 %v762
      %838 = vmatprep.subr.mxu0 0.0
      %839 = vmatpush2.msra.mxu0 %v761
      %840 = vmatprep.subr.mxu0 0.0
      %841 = vmatpush2.msra.mxu0 %v760
      %842 = vmatprep.subr.mxu0 0.0
      %843 = vmatpush2.msra.mxu0 %v759
      %844 = vmatprep.subr.mxu0 0.0
      %845 = vmatpush2.msra.mxu0 %v758
      %846 = vmatprep.subr.mxu0 0.0
      %847 = vmatpush2.msra.mxu0 %v757
      %848 = vmatprep.mubr.f32.mxu0 %v781
      %849 = vmatmul.mubr.f32.gmra.mxu0 %v780
      %v850 = vpop.f32.mrf.mxu0
      %v851 = vadd.f32 0.0, %v850
      %v852 = vpop.f32.mrf.mxu0
      %853 = vdwg.mxu0
      %v854 = vmul.f32 %v851, 0.00048828125
      %v855 = vld [vmem:[%s4] sm:$0xff]
      %v856 = vld [vmem:[%s4 + $0x8] sm:$0xff]
      %vm857 = vcmask 64512
      %v859 = vsel %vm857, %v854, 0
      %861 = vmatprep.subr.mxu0 0.0
      %862 = vmatpush1.msra.mxu0 0.0
      %863 = vmatprep.subr.mxu0 0.0
      %864 = vmatpush1.msra.mxu0 0.0
      %865 = vmatprep.subr.mxu0 0.0
      %866 = vmatpush1.msra.mxu0 0.0
      %867 = vmatprep.subr.mxu0 0.0
      %868 = vmatpush1.msra.mxu0 0.0
      %869 = vmatprep.subr.mxu0 0.0
      %870 = vmatpush1.msra.mxu0 0.0
      %871 = vmatprep.subr.mxu0 0.0
      %872 = vmatpush1.msra.mxu0 0.0
      %873 = vmatprep.subr.mxu0 0.0
      %874 = vmatpush1.msra.mxu0 0.0
      %875 = vmatprep.subr.mxu0 0.0
      %876 = vmatpush1.msra.mxu0 0.0
      %877 = vmatprep.subr.mxu0 0.0
      %878 = vmatpush1.msra.mxu0 0.0
      %879 = vmatprep.subr.mxu0 0.0
      %880 = vmatpush1.msra.mxu0 0.0
      %881 = vmatprep.subr.mxu0 0.0
      %882 = vmatpush1.msra.mxu0 0.0
      %883 = vmatprep.subr.mxu0 0.0
      %884 = vmatpush1.msra.mxu0 0.0
      %885 = vmatprep.subr.mxu0 0.0
      %886 = vmatpush1.msra.mxu0 0.0
      %887 = vmatprep.subr.mxu0 0.0
      %888 = vmatpush1.msra.mxu0 0.0
      %889 = vmatprep.subr.mxu0 0.0
      %890 = vmatpush1.msra.mxu0 0.0
      %891 = vmatprep.subr.mxu0 %v856
      %892 = vmatpush1.msra.mxu0 %v855
      %893 = vmatprep.subr.mxu0 0.0
      %894 = vmatpush2.msra.mxu0 0.0
      %895 = vmatprep.subr.mxu0 0.0
      %896 = vmatpush2.msra.mxu0 0.0
      %897 = vmatprep.subr.mxu0 0.0
      %898 = vmatpush2.msra.mxu0 0.0
      %899 = vmatprep.subr.mxu0 0.0
      %900 = vmatpush2.msra.mxu0 0.0
      %901 = vmatprep.subr.mxu0 0.0
      %902 = vmatpush2.msra.mxu0 0.0
      %903 = vmatprep.subr.mxu0 0.0
      %904 = vmatpush2.msra.mxu0 0.0
      %905 = vmatprep.subr.mxu0 0.0
      %906 = vmatpush2.msra.mxu0 0.0
      %907 = vmatprep.subr.mxu0 0.0
      %908 = vmatpush2.msra.mxu0 0.0
      %909 = vmatprep.subr.mxu0 0.0
      %910 = vmatpush2.msra.mxu0 0.0
      %911 = vmatprep.subr.mxu0 0.0
      %912 = vmatpush2.msra.mxu0 0.0
      %913 = vmatprep.subr.mxu0 0.0
      %914 = vmatpush2.msra.mxu0 0.0
      %915 = vmatprep.subr.mxu0 0.0
      %916 = vmatpush2.msra.mxu0 0.0
      %917 = vmatprep.subr.mxu0 0.0
      %918 = vmatpush2.msra.mxu0 0.0
      %919 = vmatprep.subr.mxu0 0.0
      %920 = vmatpush2.msra.mxu0 0.0
      %921 = vmatprep.subr.mxu0 0.0
      %922 = vmatpush2.msra.mxu0 0.0
      %923 = vmatprep.subr.mxu0 0.0
      %924 = vmatpush2.msra.mxu0 0.0
      %925 = vmatprep.mubr.f32.mxu0 0.0
      %926 = vmatmul.mubr.f32.gmra.mxu0 %v859
      %v927 = vpop.f32.mrf.mxu0
      %v928 = vadd.f32 0.0, %v927
      %v929 = vpop.f32.mrf.mxu0
      %v930 = vadd.f32 0.0, %v929
      %931 = vdwg.mxu0
      %v932 = vmul.f32 %v928, %v928
      %v933 = vmul.f32 %v930, %v930
      %v936 = vrot.slane %v932, 7
      %v937 = vrot.slane %v933, 7
      %v940 = vsub.f32 %v928, %v936
      %v941 = vsub.f32 %v930, %v937
      %v942 = vadd.f32 %v940, 1e-05
      %v943 = vadd.f32 %v941, 1e-05
      %v944 = vrsqrt.pop %v942
      %v945 = vrsqrt.pop %v943
      %v946 = vld [vmem:[%s5] sm:$0x3]
      %v949 = vcombine.low %v944, %v945
      %v951 = vunpack.c.l.s4 1966171168
      %v952 = vunpack.c.0.s8 %v951
      %v953 = vlaneseq
      %v954 = vshrl.u32 %v953, 7
      %v955 = vsub.s32 %v952, %v954
      %v956 = vrot.slane %v949, %v955
      %v957 = vcombine.high %v956, %v956
      %v959 = vunpack.c.l.s4 1966171168
      %v960 = vunpack.c.0.s8 %v959
      %v961 = vlaneseq
      %v962 = vshrl.u32 %v961, 7
      %v963 = vsub.s32 %v960, %v962
      %v964 = vrot.slane %v957, %v963
      %v966 = vmul.f32 %v946, %v964
      %v967 = vld [vmem:[%s6] sm:$0x3]
      %v969 = vlaneseq
      %v970 = vshrl.u32 %v969, 7
      %v971 = vsub.s32 0, %v970
      %v972 = vrot.slane %v966, %v971
      %v973 = vlaneseq
      %v974 = vshrl.u32 %v973, 7
      %v975 = vsub.s32 1, %v974
      %v976 = vrot.slane %v966, %v975
      %v979 = vmul.f32 %v928, %v972
      %v980 = vmul.f32 %v930, %v976
      %v983 = vcombine.low %v979, %v980
      %v985 = vunpack.c.l.s4 1966171168
      %v986 = vunpack.c.0.s8 %v985
      %v987 = vlaneseq
      %v988 = vshrl.u32 %v987, 7
      %v989 = vsub.s32 %v986, %v988
      %v990 = vrot.slane %v983, %v989
      %v992 = vunpack.c.l.s4 1966171168
      %v993 = vunpack.c.0.s8 %v992
      %v994 = vlaneseq
      %v995 = vshrl.u32 %v994, 7
      %v996 = vsub.s32 %v993, %v995
      %v997 = vrot.slane %v990, %v996
      %v999 = vsub.f32 %v967, %v997
      %v1000 = vld [vmem:[#allocation6] sm:$0xff]
      %v1001 = vld [vmem:[#allocation6 + $0x8] sm:$0xff]
      %v1002 = vld [vmem:[#allocation6 + $0x10] sm:$0xff]
      %v1003 = vld [vmem:[#allocation6 + $0x18] sm:$0xff]
      %v1004 = vld [vmem:[#allocation6 + $0x20] sm:$0xff]
      %v1005 = vld [vmem:[#allocation6 + $0x28] sm:$0xff]
      %v1006 = vld [vmem:[#allocation6 + $0x30] sm:$0xff]
      %v1007 = vld [vmem:[#allocation6 + $0x38] sm:$0xff]
      %v1008 = vld [vmem:[#allocation6 + $0x40] sm:$0xff]
      %v1009 = vld [vmem:[#allocation6 + $0x48] sm:$0xff]
      %v1010 = vld [vmem:[#allocation6 + $0x50] sm:$0xff]
      %v1011 = vld [vmem:[#allocation6 + $0x58] sm:$0xff]
      %v1012 = vld [vmem:[#allocation6 + $0x60] sm:$0xff]
      %v1013 = vld [vmem:[#allocation6 + $0x68] sm:$0xff]
      %v1014 = vld [vmem:[#allocation6 + $0x70] sm:$0xff]
      %v1015 = vld [vmem:[#allocation6 + $0x78] sm:$0xff]
      %v1016 = vmul.f32 %v1000, %v972
      %v1017 = vmul.f32 %v1001, %v976
      %v1018 = vmul.f32 %v1002, %v972
      %v1019 = vmul.f32 %v1003, %v976
      %v1020 = vmul.f32 %v1004, %v972
      %v1021 = vmul.f32 %v1005, %v976
      %v1022 = vmul.f32 %v1006, %v972
      %v1023 = vmul.f32 %v1007, %v976
      %v1024 = vmul.f32 %v1008, %v972
      %v1025 = vmul.f32 %v1009, %v976
      %v1026 = vmul.f32 %v1010, %v972
      %v1027 = vmul.f32 %v1011, %v976
      %v1028 = vmul.f32 %v1012, %v972
      %v1029 = vmul.f32 %v1013, %v976
      %v1030 = vmul.f32 %v1014, %v972
      %v1031 = vmul.f32 %v1015, %v976
      %v1033 = vlaneseq
      %v1034 = vshrl.u32 %v1033, 7
      %v1035 = vsub.s32 0, %v1034
      %v1036 = vrot.slane %v999, %v1035
      %v1037 = vlaneseq
      %v1038 = vshrl.u32 %v1037, 7
      %v1039 = vsub.s32 1, %v1038
      %v1040 = vrot.slane %v999, %v1039
      %v1043 = vadd.f32 %v1016, %v1036
      %v1044 = vadd.f32 %v1017, %v1040
      %v1045 = vadd.f32 %v1018, %v1036
      %v1046 = vadd.f32 %v1019, %v1040
      %v1047 = vadd.f32 %v1020, %v1036
      %v1048 = vadd.f32 %v1021, %v1040
      %v1049 = vadd.f32 %v1022, %v1036
      %v1050 = vadd.f32 %v1023, %v1040
      %v1051 = vadd.f32 %v1024, %v1036
      %v1052 = vadd.f32 %v1025, %v1040
      %v1053 = vadd.f32 %v1026, %v1036
      %v1054 = vadd.f32 %v1027, %v1040
      %v1055 = vadd.f32 %v1028, %v1036
      %v1056 = vadd.f32 %v1029, %v1040
      %v1057 = vadd.f32 %v1030, %v1036
      %v1058 = vadd.f32 %v1031, %v1040
      %v1059 = vmax.f32 %v1043, 0.0
      %v1060 = vmax.f32 %v1044, 0.0
      %v1061 = vmax.f32 %v1045, 0.0
      %v1062 = vmax.f32 %v1046, 0.0
      %v1063 = vmax.f32 %v1047, 0.0
      %v1064 = vmax.f32 %v1048, 0.0
      %v1065 = vmax.f32 %v1049, 0.0
      %v1066 = vmax.f32 %v1050, 0.0
      %v1067 = vmax.f32 %v1051, 0.0
      %v1068 = vmax.f32 %v1052, 0.0
      %v1069 = vmax.f32 %v1053, 0.0
      %v1070 = vmax.f32 %v1054, 0.0
      %v1071 = vmax.f32 %v1055, 0.0
      %v1072 = vmax.f32 %v1056, 0.0
      %v1073 = vmax.f32 %v1057, 0.0
      %v1074 = vmax.f32 %v1058, 0.0
      %1075 = vst [vmem:[#allocation6] sm:$0xff] %v1059
      %1076 = vst [vmem:[#allocation6 + $0x8] sm:$0xff] %v1060
      %1077 = vst [vmem:[#allocation6 + $0x10] sm:$0xff] %v1061
      %1078 = vst [vmem:[#allocation6 + $0x18] sm:$0xff] %v1062
      %1079 = vst [vmem:[#allocation6 + $0x20] sm:$0xff] %v1063
      %1080 = vst [vmem:[#allocation6 + $0x28] sm:$0xff] %v1064
      %1081 = vst [vmem:[#allocation6 + $0x30] sm:$0xff] %v1065
      %1082 = vst [vmem:[#allocation6 + $0x38] sm:$0xff] %v1066
      %1083 = vst [vmem:[#allocation6 + $0x40] sm:$0xff] %v1067
      %1084 = vst [vmem:[#allocation6 + $0x48] sm:$0xff] %v1068
      %1085 = vst [vmem:[#allocation6 + $0x50] sm:$0xff] %v1069
      %1086 = vst [vmem:[#allocation6 + $0x58] sm:$0xff] %v1070
      %1087 = vst [vmem:[#allocation6 + $0x60] sm:$0xff] %v1071
      %1088 = vst [vmem:[#allocation6 + $0x68] sm:$0xff] %v1072
      %1089 = vst [vmem:[#allocation6 + $0x70] sm:$0xff] %v1073
      %1090 = vst [vmem:[#allocation6 + $0x78] sm:$0xff] %v1074
    $region41: #{tpu_custom_call.1} parent=1 // pred_fallthru
      _
    // Predicated region
    $region42: #{tpu_custom_call.1} parent=1 // pred_check
      _
    $region43: #{tpu_custom_call.1} parent=1 // pred_check_branch
      %1092 = sbr.rel (0) target = $region45
    $region44: #{tpu_custom_call.1} parent=1 // pred_region
      %s1094 = ssub.s32 2048, 2048
      %1095 = vsyncadd [#allocation5], %s1094
      %s1096 = sshll.u32 [#allocation6], 4
      %s1097 = int_to_ptr.vmem [resolvable:$true] %s1096
      %1102 = dma.vmem_to_hbm [thread:$0]  %s1097, 2048, %s7, [#allocation5], 256, 256, 16
    $region45: #{tpu_custom_call.1} parent=1 // pred_fallthru
      _
    // Predicated region
    $region46: #{tpu_custom_call.1} parent=1 // pred_check
      _
    $region47: #{tpu_custom_call.1} parent=1 // pred_check_branch
      %1104 = sbr.rel (0) target = $region49
    $region48: #{tpu_custom_call.1} parent=1 // pred_region
      %1105 = dma.done [#allocation5], 2048
    $region49: #{tpu_custom_call.1} parent=1 // pred_fallthru
      _
    %1106 = vsyncpa [#allocation4], 1
    %1107 = vsyncpa [#allocation5], 1

</llo_original>
